<compile_context>
chip_gen: v5e
topology: v5e:2x2
jax: 0.10.0
libtpu: 0.0.40
codegen_flags: <defaults>
</compile_context>

<pallas_src>
import functools

import jax
import jax.numpy as jnp
from jax.experimental import pallas as pl
from jax.experimental.pallas import tpu as pltpu


_GELU_C0 = 0.7978845608028654            # sqrt(2/pi)
_GELU_C1 = _GELU_C0 * 0.044715           # folded: c*(h + 0.044715*h^3) = h*(C0 + C1*h^2)


def _round_up(x, m):
    return (x + m - 1) // m * m


def _chip_config():
    """Host-side TPU-generation heuristics for tiling / VMEM / dtype knobs."""
    kind = ""
    try:
        kind = jax.devices()[0].device_kind.lower()
    except Exception:
        pass
    is_v7 = ("v7" in kind) or ("7x" in kind)
    is_v6 = "v6" in kind
    return {
        # bf16 VPU/EUP exists on v6e/v7x; elsewhere keep the GELU in fp32.
        "gelu_bf16": bool(is_v6 or is_v7),
        # v7x has 2 TensorCores per chip -> want >= 2 row-tile steps to shard.
        "num_row_splits": 2 if is_v7 else 1,
        # v7x: 64 MiB physical VMEM per TC -> cap scoped VMEM well below it.
        "vmem_cap_bytes": (44 << 20) if is_v7 else (96 << 20),
    }


def _gelu_tanh(h):
    # tanh-approximation GELU, constants folded.
    # TODO(synk): PyTorch nn.GELU defaults to the exact erf GELU; results differ
    # ~1e-3 unless the torch mlp was built with approximate='tanh'.
    return h * (0.5 * (1.0 + jnp.tanh(h * (_GELU_C0 + _GELU_C1 * (h * h)))))


# ----------------------------------------------------------------------------
# Kernels
# ----------------------------------------------------------------------------
def _mlp_resident_kernel(x_ref, w1_ref, b1_ref, w2_ref, b2_ref, o_ref, *, act_dtype):
    """Fused Linear -> GELU -> Linear for one row tile; weights stay VMEM-resident."""
    xb = x_ref[...].astype(w1_ref.dtype)           # in-register cast to the MXU dtype
    h = jnp.dot(xb, w1_ref[...], preferred_element_type=jnp.float32) + b1_ref[...]
    g = _gelu_tanh(h.astype(act_dtype))            # bf16 on v6e/v7x, fp32 elsewhere
    y = jnp.dot(g.astype(w2_ref.dtype), w2_ref[...], preferred_element_type=jnp.float32)
    o_ref[...] = (y + b2_ref[...]).astype(o_ref.dtype)


def _mlp_chunked_kernel(x_ref, w1_ref, b1_ref, w2_ref, b2_ref, o_ref, acc_ref,
                        *, act_dtype):
    """Fallback: H is a grid reduction axis carried in an fp32 VMEM accumulator."""
    k = pl.program_id(1)

    @pl.when(k == 0)
    def _init():
        # Seed the accumulator with the output bias (no separate zeros + add).
        acc_ref[...] = jnp.broadcast_to(b2_ref[...], acc_ref.shape)

    xb = x_ref[...].astype(w1_ref.dtype)
    h = jnp.dot(xb, w1_ref[...], preferred_element_type=jnp.float32) + b1_ref[...]
    g = _gelu_tanh(h.astype(act_dtype))
    acc_ref[...] += jnp.dot(g.astype(w2_ref.dtype), w2_ref[...],
                            preferred_element_type=jnp.float32)

    @pl.when(k == pl.num_programs(1) - 1)
    def _fin():
        o_ref[...] = acc_ref[...].astype(o_ref.dtype)


# ----------------------------------------------------------------------------
# Parameter init / one-time preparation (out of the per-call hot path)
# ----------------------------------------------------------------------------
def init_filter_params(key, seq_len, out_channels, scale=0.2):
    """Deterministic parameter init mirroring Filter.__init__ shapes."""
    hidden = seq_len * 4
    k0, k1, k2, k3, k4 = jax.random.split(key, 5)
    return {
        # w0 is declared in the PyTorch module but unused in forward().
        "w0": scale * jax.random.normal(k0, (seq_len,), jnp.float32),
        "w1": 0.02 * jax.random.normal(k1, (seq_len, hidden), jnp.float32),
        "b1": 0.02 * jax.random.normal(k2, (hidden,), jnp.float32),
        "w2": 0.02 * jax.random.normal(k3, (hidden, out_channels), jnp.float32),
        "b2": 0.02 * jax.random.normal(k4, (out_channels,), jnp.float32),
    }


def prepare_filter_params(params, *, use_bf16=True, th=512,
                          resident_weight_bytes=8 << 20):
    """One-time weight preparation: dtype cast and (only if needed) H padding.

    Called once; the result is reused by every filter_forward call so no
    pad/cast HBM passes happen in the per-call hot path.
    """
    w1 = jnp.asarray(params["w1"])
    b1 = jnp.asarray(params["b1"])
    w2 = jnp.asarray(params["w2"])
    b2 = jnp.asarray(params["b2"])
    L, H = w1.shape
    O = w2.shape[1]

    mx_dtype = jnp.bfloat16 if use_bf16 else jnp.float32
    mx_item = jnp.dtype(mx_dtype).itemsize
    resident = (L * H + H * O) * mx_item <= resident_weight_bytes

    if resident:
        Hp, th_eff = H, H          # weights stay fully resident; no padding needed
    else:
        # H-chunked fallback: pick th near the request and pad H once so the
        # chunk divides exactly (zero padding is inert: padded h columns meet
        # zero W2 rows).
        th_eff = min(_round_up(max(th, 128), 128), _round_up(H, 128))
        Hp = _round_up(H, th_eff)
        if Hp != H:
            w1 = jnp.pad(w1, ((0, 0), (0, Hp - H)))
            b1 = jnp.pad(b1, (0, Hp - H))
            w2 = jnp.pad(w2, ((0, Hp - H), (0, 0)))

    return {
        "w1": w1.astype(mx_dtype),
        "b1": b1.astype(jnp.float32).reshape(1, Hp),
        "w2": w2.astype(mx_dtype),
        "b2": b2.astype(jnp.float32).reshape(1, O),
        "meta": {"L": L, "H": H, "Hp": Hp, "O": O, "th": th_eff,
                 "resident": resident, "mx_dtype": mx_dtype},
    }


# ----------------------------------------------------------------------------
# Forward
# ----------------------------------------------------------------------------
def filter_forward(x, prepared, *, tm=None, chip=None):
    """Pallas version of Filter.forward: returns (x_res, x_filter)."""
    chip = chip or _chip_config()
    meta = prepared["meta"]
    w1, b1, w2, b2 = prepared["w1"], prepared["b1"], prepared["w2"], prepared["b2"]
    L, Hp, O = meta["L"], meta["Hp"], meta["O"]
    resident, th = meta["resident"], meta["th"]

    B, C, Lx = x.shape
    assert Lx == L, f"x last dim {Lx} != seq_len {L}"
    M = B * C
    x2d = x.reshape(M, L)          # contiguous view; no data movement under jit

    # ---- row tile -----------------------------------------------------------
    if tm is None:
        # Chunked path re-streams weight chunks once per row tile, so a bigger
        # tile amortizes that on 1-TC chips; v7x keeps 256 (64 MiB VMEM).
        tm = 256 if (resident or chip["num_row_splits"] > 1) else 512
    row_align = 8
    tm_eff = max(row_align, _round_up(min(tm, _round_up(M, row_align)), row_align))
    if chip["num_row_splits"] > 1:
        # Only shrink the tile for megacore parallelism on multi-TC chips.
        cap = max(row_align, _round_up(pl.cdiv(M, chip["num_row_splits"]), row_align))
        tm_eff = min(tm_eff, cap)
    grid_m = pl.cdiv(M, tm_eff)

    # ---- dtypes -------------------------------------------------------------
    mx_dtype = meta["mx_dtype"]
    act_dtype = (jnp.bfloat16
                 if (chip["gelu_bf16"] and mx_dtype == jnp.bfloat16)
                 else jnp.float32)
    out_dtype = x.dtype
    x_item = jnp.dtype(x.dtype).itemsize
    mx_item = jnp.dtype(mx_dtype).itemsize
    out_item = jnp.dtype(out_dtype).itemsize

    cost = pl.CostEstimate(
        flops=2 * M * (L * Hp + Hp * O),
        transcendentals=M * Hp,
        bytes_accessed=(M * L * x_item + (L * Hp + Hp * O) * mx_item
                        + (Hp + O) * 4 + M * O * out_item),
    )

    if resident:
        # Weights resident: 1-D grid over row tiles; weights DMA'd once.
        vmem_est = (2 * tm_eff * _round_up(L, 128) * x_item           # x tile
                    + 2 * _round_up(L, 16) * _round_up(Hp, 128) * mx_item   # W1
                    + 2 * _round_up(Hp, 16) * _round_up(O, 128) * mx_item   # W2
                    + 2 * 8 * (_round_up(Hp, 128) + _round_up(O, 128)) * 4  # biases
                    + 2 * tm_eff * _round_up(O, 128) * out_item       # out tile
                    + 2 * tm_eff * _round_up(Hp, 128) * 4)            # h / GELU temps
        vmem_limit = int(min(max(2 * vmem_est, 32 << 20), chip["vmem_cap_bytes"]))

        out = pl.pallas_call(
            functools.partial(_mlp_resident_kernel, act_dtype=act_dtype),
            out_shape=jax.ShapeDtypeStruct((M, O), out_dtype),
            grid_spec=pltpu.PrefetchScalarGridSpec(
                num_scalar_prefetch=0,
                grid=(grid_m,),
                in_specs=[
                    pl.BlockSpec((tm_eff, L), lambda i: (i, 0)),   # x rows
                    pl.BlockSpec((L, Hp), lambda i: (0, 0)),       # W1 (resident)
                    pl.BlockSpec((1, Hp), lambda i: (0, 0)),       # b1 (resident)
                    pl.BlockSpec((Hp, O), lambda i: (0, 0)),       # W2 (resident)
                    pl.BlockSpec((1, O), lambda i: (0, 0)),        # b2 (resident)
                ],
                out_specs=pl.BlockSpec((tm_eff, O), lambda i: (i, 0)),
            ),
            compiler_params=pltpu.CompilerParams(
                dimension_semantics=("parallel",),
                vmem_limit_bytes=vmem_limit,
            ),
            cost_estimate=cost,
        )(x2d, w1, b1, w2, b2)
    else:
        # Fallback: H reduction on the grid with an fp32 accumulator.
        grid_h = Hp // th        # exact: prepare() padded Hp to a multiple of th
        vmem_est = (2 * tm_eff * _round_up(L, 128) * x_item
                    + 2 * _round_up(L, 16) * th * mx_item
                    + 2 * th * _round_up(O, 128) * mx_item
                    + 2 * 8 * (th + _round_up(O, 128)) * 4
                    + 2 * tm_eff * _round_up(O, 128) * out_item
                    + tm_eff * _round_up(O, 128) * 4       # fp32 accumulator
                    + 2 * tm_eff * th * 4)                 # h / GELU temps
        vmem_limit = int(min(max(2 * vmem_est, 32 << 20), chip["vmem_cap_bytes"]))

        out = pl.pallas_call(
            functools.partial(_mlp_chunked_kernel, act_dtype=act_dtype),
            out_shape=jax.ShapeDtypeStruct((M, O), out_dtype),
            grid_spec=pltpu.PrefetchScalarGridSpec(
                num_scalar_prefetch=0,
                grid=(grid_m, grid_h),
                in_specs=[
                    pl.BlockSpec((tm_eff, L), lambda i, k: (i, 0)),  # x (not re-fetched over k)
                    pl.BlockSpec((L, th), lambda i, k: (0, k)),      # W1 chunk
                    pl.BlockSpec((1, th), lambda i, k: (0, k)),      # b1 chunk
                    pl.BlockSpec((th, O), lambda i, k: (k, 0)),      # W2 chunk
                    pl.BlockSpec((1, O), lambda i, k: (0, 0)),       # b2
                ],
                out_specs=pl.BlockSpec((tm_eff, O), lambda i, k: (i, 0)),
                scratch_shapes=[pltpu.VMEM((tm_eff, O), jnp.float32)],
            ),
            compiler_params=pltpu.CompilerParams(
                dimension_semantics=("parallel", "arbitrary"),
                vmem_limit_bytes=vmem_limit,
            ),
            cost_estimate=cost,
        )(x2d, w1, b1, w2, b2)

    x_res = out.reshape(B, C, O)
    x_filter = x
    return x_res, x_filter


def _reference_forward(x, params):
    """Pure-JAX fp32 reference of the same math (sanity check)."""
    h = jnp.einsum("bcl,lh->bch", x, params["w1"]) + params["b1"]
    h = _gelu_tanh(h)
    y = jnp.einsum("bch,ho->bco", h, params["w2"]) + params["b2"]
    return y, x


if __name__ == "__main__":
    # Small shapes consistent with the module: seq_len (=embed_size)=8,
    # hidden=4*8=32, out_channels=16, batch=2, channels=4.
    SEQ_LEN = 8
    OUT_CHANNELS = 16
    B, C = 2, 4

    key = jax.random.PRNGKey(0)
    kx, kp = jax.random.split(key)
    x = jax.random.normal(kx, (B, C, SEQ_LEN), jnp.float32)
    params = init_filter_params(kp, SEQ_LEN, OUT_CHANNELS)

    # One-time weight preparation (cast / padding) outside the hot path.
    prepared = prepare_filter_params(params)
    fwd = jax.jit(lambda xx: filter_forward(xx, prepared))

    x_res, x_filter = fwd(x)
    jax.block_until_ready((x_res, x_filter))

    # Sanity check against the pure-JAX fp32 reference (bf16 MXU inputs ->
    # slightly looser tolerance).
    ref_res, ref_filter = _reference_forward(x, params)
    assert x_res.shape == (B, C, OUT_CHANNELS)
    assert x_filter.shape == x.shape
    assert jnp.allclose(x_res, ref_res, atol=2e-2, rtol=2e-2)
    assert jnp.array_equal(x_filter, ref_filter)

    # TODO(synk): circular_convolution (rfft/irfft) is unused in forward(); no
    # Pallas FFT primitive exists, so it is intentionally not implemented.
    print("KERNEL_OK")
</pallas_src>

<mosaic_0001>
module attributes {stable_mosaic.version = 11 : i64} {
  func.func @_mlp_resident_kernel(%arg0: i32, %arg1: memref<8x8xf32, #tpu.memory_space<vmem>>, %arg2: memref<8x32xbf16, #tpu.memory_space<vmem>>, %arg3: memref<1x32xf32, #tpu.memory_space<vmem>>, %arg4: memref<32x16xbf16, #tpu.memory_space<vmem>>, %arg5: memref<1x16xf32, #tpu.memory_space<vmem>>, %arg6: memref<8x16xf32, #tpu.memory_space<vmem>>) attributes {dimension_semantics = [#tpu.dimension_semantics<parallel>], iteration_bounds = array<i64: 1>, scalar_prefetch = 0 : i64, scratch_operands = 0 : i64, tpu.core_type = #tpu.core_type<tc>, window_params = [{transform_indices = @transform_0, window_bounds = array<i64: 8, 8>}, {pipeline_mode = #tpu.pipeline_mode<synchronous>, transform_indices = @transform_1, window_bounds = array<i64: 8, 32>}, {pipeline_mode = #tpu.pipeline_mode<synchronous>, transform_indices = @transform_2, window_bounds = array<i64: 1, 32>}, {pipeline_mode = #tpu.pipeline_mode<synchronous>, transform_indices = @transform_3, window_bounds = array<i64: 32, 16>}, {pipeline_mode = #tpu.pipeline_mode<synchronous>, transform_indices = @transform_4, window_bounds = array<i64: 1, 16>}, {transform_indices = @transform_5, window_bounds = array<i64: 8, 16>}]} {
    %c0 = arith.constant 0 : index
    %c0_0 = arith.constant 0 : index
    %0 = vector.load %arg1[%c0, %c0_0] : memref<8x8xf32, #tpu.memory_space<vmem>>, vector<8x8xf32>
    %1 = arith.truncf %0 : vector<8x8xf32> to vector<8x8xbf16>
    %c0_1 = arith.constant 0 : index
    %c0_2 = arith.constant 0 : index
    %2 = vector.load %arg2[%c0_1, %c0_2] : memref<8x32xbf16, #tpu.memory_space<vmem>>, vector<8x32xbf16>
    %cst = arith.constant dense<0.000000e+00> : vector<8x32xf32>
    %3 = tpu.matmul %1, %2, %cst {dimension_numbers = #tpu.dot_dimension_numbers<[1], [0], [0], [1], [0, 0, 1, 1], [], []>} : vector<8x8xbf16>, vector<8x32xbf16>, vector<8x32xf32> -> vector<8x32xf32>
    %c0_3 = arith.constant 0 : index
    %c0_4 = arith.constant 0 : index
    %4 = vector.load %arg3[%c0_3, %c0_4] : memref<1x32xf32, #tpu.memory_space<vmem>>, vector<1x32xf32>
    %5 = vector.broadcast %4 : vector<1x32xf32> to vector<8x32xf32>
    %6 = arith.addf %3, %5 : vector<8x32xf32>
    %7 = arith.mulf %6, %6 : vector<8x32xf32>
    %cst_5 = arith.constant 0.0356774069 : f32
    %8 = vector.broadcast %cst_5 : f32 to vector<8x32xf32>
    %9 = arith.mulf %8, %7 : vector<8x32xf32>
    %cst_6 = arith.constant 0.797884583 : f32
    %10 = vector.broadcast %cst_6 : f32 to vector<8x32xf32>
    %11 = arith.addf %10, %9 : vector<8x32xf32>
    %12 = arith.mulf %6, %11 : vector<8x32xf32>
    %13 = math.tanh %12 : vector<8x32xf32>
    %cst_7 = arith.constant 1.000000e+00 : f32
    %14 = vector.broadcast %cst_7 : f32 to vector<8x32xf32>
    %15 = arith.addf %14, %13 : vector<8x32xf32>
    %cst_8 = arith.constant 5.000000e-01 : f32
    %16 = vector.broadcast %cst_8 : f32 to vector<8x32xf32>
    %17 = arith.mulf %16, %15 : vector<8x32xf32>
    %18 = arith.mulf %6, %17 : vector<8x32xf32>
    %19 = arith.truncf %18 : vector<8x32xf32> to vector<8x32xbf16>
    %c0_9 = arith.constant 0 : index
    %c0_10 = arith.constant 0 : index
    %20 = vector.load %arg4[%c0_9, %c0_10] : memref<32x16xbf16, #tpu.memory_space<vmem>>, vector<32x16xbf16>
    %cst_11 = arith.constant dense<0.000000e+00> : vector<8x16xf32>
    %21 = tpu.matmul %19, %20, %cst_11 {dimension_numbers = #tpu.dot_dimension_numbers<[1], [0], [0], [1], [0, 0, 1, 1], [], []>} : vector<8x32xbf16>, vector<32x16xbf16>, vector<8x16xf32> -> vector<8x16xf32>
    %c0_12 = arith.constant 0 : index
    %c0_13 = arith.constant 0 : index
    %22 = vector.load %arg5[%c0_12, %c0_13] : memref<1x16xf32, #tpu.memory_space<vmem>>, vector<1x16xf32>
    %23 = vector.broadcast %22 : vector<1x16xf32> to vector<8x16xf32>
    %24 = arith.addf %21, %23 : vector<8x16xf32>
    %c0_14 = arith.constant 0 : index
    %c0_15 = arith.constant 0 : index
    %25 = vector.load %arg6[%c0_14, %c0_15] : memref<8x16xf32, #tpu.memory_space<vmem>>, vector<8x16xf32>
    tpu.vector_store %arg6[%c0_14, %c0_15], %24 {strides = array<i32>} : memref<8x16xf32, #tpu.memory_space<vmem>>, vector<8x16xf32>,
    return
  }
  func.func @transform_0(%arg0: i32) -> (i32, i32) {
    %c0_i32 = arith.constant 0 : i32
    %c0_i32_0 = arith.constant 0 : i32
    return %arg0, %c0_i32 : i32, i32
  }
  func.func @transform_1(%arg0: i32) -> (i32, i32) {
    %c0_i32 = arith.constant 0 : i32
    %c0_i32_0 = arith.constant 0 : i32
    %c0_i32_1 = arith.constant 0 : i32
    return %c0_i32, %c0_i32_0 : i32, i32
  }
  func.func @transform_2(%arg0: i32) -> (i32, i32) {
    %c0_i32 = arith.constant 0 : i32
    %c0_i32_0 = arith.constant 0 : i32
    %c0_i32_1 = arith.constant 0 : i32
    return %c0_i32, %c0_i32_0 : i32, i32
  }
  func.func @transform_3(%arg0: i32) -> (i32, i32) {
    %c0_i32 = arith.constant 0 : i32
    %c0_i32_0 = arith.constant 0 : i32
    %c0_i32_1 = arith.constant 0 : i32
    return %c0_i32, %c0_i32_0 : i32, i32
  }
  func.func @transform_4(%arg0: i32) -> (i32, i32) {
    %c0_i32 = arith.constant 0 : i32
    %c0_i32_0 = arith.constant 0 : i32
    %c0_i32_1 = arith.constant 0 : i32
    return %c0_i32, %c0_i32_0 : i32, i32
  }
  func.func @transform_5(%arg0: i32) -> (i32, i32) {
    %c0_i32 = arith.constant 0 : i32
    %c0_i32_0 = arith.constant 0 : i32
    return %arg0, %c0_i32 : i32, i32
  }
}

</mosaic_0001>

<llo_original>
// kernel: _lambda_.1
$region0: #{_lambda_.1}
  #allocation0 [shape = 'u32[]', space=smem, size = 0x4, offset = 0x4, fixed_abs, tag = 'smem constant byte address 0x4 - core index']
  #allocation1 [shape = 'u32[72,128]{1,0:T(1,128)}', space=vmem, size = 0x9000, scoped, tag = 'internal scratch']
  %s0 = inlined_call_operand.hbm [shape: f32[8,8], index: 0, kind: input, shape index: {}]
  %s1 = inlined_call_operand.hbm [shape: bf16[8,32], index: 1, kind: input, shape index: {}]
  %s2 = inlined_call_operand.vmem [shape: f32[1,32], index: 2, kind: input, shape index: {}]
  %s3 = inlined_call_operand.hbm [shape: bf16[32,16], index: 3, kind: input, shape index: {}]
  %s4 = inlined_call_operand.vmem [shape: f32[1,16], index: 4, kind: input, shape index: {}]
  %s5 = inlined_call_operand.hbm [shape: f32[8,16], index: 5, kind: output, shape index: {}]
  %s6 = sld [smem:[#allocation0]]
  $region42: #{_lambda_.1} parent=0
    _
  %s8 = ssub.s32 1, %s6
  %s9 = scalar_select 0, %s8, %s6
  $region1: #{_lambda_.1} parent=0
    #allocation2 [shape = 'u8[4096]{0}', space=vmem, size = 0x1000, scoped, tag = 'input window, operand 0, single buffered']
    #allocation3 [shape = 's32[1]{0}', space=sflag, size = 0x4, scoped, tag = 'scoped memory for _lambda_.1']
    #allocation4 [shape = 's32[1]{0}', space=sflag, size = 0x4, scoped, tag = 'scoped memory for _lambda_.1']
    #allocation5 [shape = 'u8[2048]{0}', space=vmem, size = 0x800, scoped, tag = 'input window, operand 1, single buffered']
    #allocation6 [shape = 's32[1]{0}', space=sflag, size = 0x4, scoped, tag = 'scoped memory for _lambda_.1']
    #allocation7 [shape = 'u8[8192]{0}', space=vmem, size = 0x2000, scoped, tag = 'input window, operand 3, single buffered']
    #allocation8 [shape = 'u8[4096]{0}', space=vmem, size = 0x1000, scoped, tag = 'output window, operand 0, single buffered']
    %10 = vsyncpa [#allocation3], 0
    %11 = vsyncpa [#allocation6], 0
    %12 = vsyncpa [#allocation4], 0
    // Predicated region
    $region2: #{_lambda_.1} parent=1 // pred_check
      _
    $region3: #{_lambda_.1} parent=1 // pred_check_branch
      %14 = sbr.rel (0) target = $region5
    $region4: #{_lambda_.1} parent=1 // pred_region
      %16 = vsyncadd [#allocation3], 0
      %s18 = sshll.u32 %s0, 4
      %s19 = int_to_ptr.hbm [resolvable:$true] %s18
      %s20 = sshll.u32 [#allocation2], 4
      %s21 = int_to_ptr.vmem [resolvable:$true] %s20
      %23 = dma.hbm_to_vmem [thread:$0]  %s19, 128, %s21, [#allocation3]
    $region5: #{_lambda_.1} parent=1 // pred_fallthru
      _
    // Predicated region
    $region6: #{_lambda_.1} parent=1 // pred_check
      _
    $region7: #{_lambda_.1} parent=1 // pred_check_branch
      %25 = sbr.rel (0) target = $region9
    $region8: #{_lambda_.1} parent=1 // pred_region
      %27 = vsyncadd [#allocation6], 0
      %s29 = sshll.u32 %s1, 4
      %s30 = int_to_ptr.hbm [resolvable:$true] %s29
      %s31 = sshll.u32 [#allocation5], 4
      %s32 = int_to_ptr.vmem [resolvable:$true] %s31
      %34 = dma.hbm_to_vmem [thread:$0]  %s30, 64, %s32, [#allocation6]
    $region9: #{_lambda_.1} parent=1 // pred_fallthru
      _
    // Predicated region
    $region10: #{_lambda_.1} parent=1 // pred_check
      _
    $region11: #{_lambda_.1} parent=1 // pred_check_branch
      %36 = sbr.rel (0) target = $region13
    $region12: #{_lambda_.1} parent=1 // pred_region
      _
    $region13: #{_lambda_.1} parent=1 // pred_fallthru
      _
    // Predicated region
    $region14: #{_lambda_.1} parent=1 // pred_check
      _
    $region15: #{_lambda_.1} parent=1 // pred_check_branch
      %38 = sbr.rel (0) target = $region17
    $region16: #{_lambda_.1} parent=1 // pred_region
      %40 = vsyncadd [#allocation6], 0
      %s41 = sshll.u32 %s3, 4
      %s42 = int_to_ptr.hbm [resolvable:$true] %s41
      %s43 = sshll.u32 [#allocation7], 4
      %s44 = int_to_ptr.vmem [resolvable:$true] %s43
      %49 = dma.hbm_to_vmem [thread:$0]  %s42, 256, %s44, [#allocation6], 64, 64, 4
    $region17: #{_lambda_.1} parent=1 // pred_fallthru
      _
    // Predicated region
    $region18: #{_lambda_.1} parent=1 // pred_check
      _
    $region19: #{_lambda_.1} parent=1 // pred_check_branch
      %51 = sbr.rel (0) target = $region21
    $region20: #{_lambda_.1} parent=1 // pred_region
      _
    $region21: #{_lambda_.1} parent=1 // pred_fallthru
      _
    // Predicated region
    $region22: #{_lambda_.1} parent=1 // pred_check
      _
    $region23: #{_lambda_.1} parent=1 // pred_check_branch
      %53 = sbr.rel (0) target = $region25
    $region24: #{_lambda_.1} parent=1 // pred_region
      %55 = dma.done [#allocation3], 128
    $region25: #{_lambda_.1} parent=1 // pred_fallthru
      _
    // Predicated region
    $region26: #{_lambda_.1} parent=1 // pred_check
      _
    $region27: #{_lambda_.1} parent=1 // pred_check_branch
      %57 = sbr.rel (0) target = $region29
    $region28: #{_lambda_.1} parent=1 // pred_region
      %59 = dma.done [#allocation6], 64
    $region29: #{_lambda_.1} parent=1 // pred_fallthru
      _
    // Predicated region
    $region30: #{_lambda_.1} parent=1 // pred_check
      _
    $region31: #{_lambda_.1} parent=1 // pred_check_branch
      %61 = sbr.rel (0) target = $region33
    $region32: #{_lambda_.1} parent=1 // pred_region
      %63 = dma.done [#allocation6], 256
    $region33: #{_lambda_.1} parent=1 // pred_fallthru
      _
    %v65 = vld [vmem:[#allocation2] sm:$0xff]
    %v66 = vpack.c.bf16 %v65, %v65
    %v67 = vld [vmem:[#allocation5] sm:$0xf]
    %v68 = vld [vmem:[%s2] sm:$0x1]
    %v70 = vperm.slane %v68, 0
    %vm72 = vcmask 64512
    %v74 = vsel %vm72, %v66, 0
    %vm76 = vcmask 1043456
    %v78 = vsel %vm76, %v67, 0
    %80 = vmatpush.bf16.msra.mxu0 0
    %81 = vmatpush.bf16.msra.mxu0 0
    %82 = vmatpush.bf16.msra.mxu0 0
    %83 = vmatpush.bf16.msra.mxu0 0
    %84 = vmatpush.bf16.msra.mxu0 0
    %85 = vmatpush.bf16.msra.mxu0 0
    %86 = vmatpush.bf16.msra.mxu0 0
    %87 = vmatpush.bf16.msra.mxu0 %v78
    %88 = vmatmul.bf16.gmra.mxu0 %v74
    %v89 = vpop.f32.mrf.mxu0
    %v90 = vadd.f32 %v70, %v89
    %v91 = vpop.f32.mrf.mxu0
    %92 = vdwg.mxu0
    %v93 = vmul.f32 %v90, %v90
    %v94 = vmul.f32 %v93, 0.035677407
    %v95 = vadd.f32 %v94, 0.7978846
    %v96 = vmul.f32 %v90, %v95
    %v97 = vtanh.pop %v96
    %v98 = vadd.f32 %v97, 1.0
    %v99 = vmul.f32 %v98, 0.5
    %v100 = vmul.f32 %v90, %v99
    %v101 = vpack.c.bf16 %v100, %v100
    %v102 = vld [vmem:[#allocation7] sm:$0xf]
    %v103 = vld [vmem:[#allocation7 + $0x4] sm:$0xf]
    %v104 = vld [vmem:[#allocation7 + $0x8] sm:$0xf]
    %v105 = vld [vmem:[#allocation7 + $0xc] sm:$0xf]
    %v106 = vld [vmem:[%s4] sm:$0x1]
    %v108 = vperm.slane %v106, 0
    %v114 = vunpack.c.l.b16 %v102
    %v115 = vunpack.c.l.b16 %v103
    %v116 = vunpack.c.l.b16 %v104
    %v117 = vunpack.c.l.b16 %v105
    %v118 = vpack.c.b16 %v115, %v114
    %v119 = vpack.c.b16 %v117, %v116
    %vm122 = vcmask 261120
    %v124 = vsel %vm122, %v101, 0
    %126 = vmatpush.bf16.msra.mxu0 0
    %127 = vmatpush.bf16.msra.mxu0 0
    %128 = vmatpush.bf16.msra.mxu0 0
    %129 = vmatpush.bf16.msra.mxu0 0
    %130 = vmatpush.bf16.msra.mxu0 0
    %131 = vmatpush.bf16.msra.mxu0 0
    %132 = vmatpush.bf16.msra.mxu0 %v119
    %133 = vmatpush.bf16.msra.mxu0 %v118
    %134 = vmatmul.bf16.gmra.mxu0 %v124
    %v135 = vpop.f32.mrf.mxu0
    %v136 = vadd.f32 %v108, %v135
    %v137 = vpop.f32.mrf.mxu0
    %138 = vdwg.mxu0
    %vm139 = vcmask 130048
    %140 = vst.msk [vmem:[#allocation8] sm:$0xff] %vm139, %v136
    // Predicated region
    $region34: #{_lambda_.1} parent=1 // pred_check
      _
    $region35: #{_lambda_.1} parent=1 // pred_check_branch
      %142 = sbr.rel (0) target = $region37
    $region36: #{_lambda_.1} parent=1 // pred_region
      %144 = vsyncadd [#allocation4], 0
      %s146 = sshll.u32 [#allocation8], 4
      %s147 = int_to_ptr.vmem [resolvable:$true] %s146
      %s148 = sshll.u32 %s5, 4
      %s149 = int_to_ptr.hbm [resolvable:$true] %s148
      %151 = dma.vmem_to_hbm [thread:$0]  %s147, 128, %s149, [#allocation4]
    $region37: #{_lambda_.1} parent=1 // pred_fallthru
      _
    // Predicated region
    $region38: #{_lambda_.1} parent=1 // pred_check
      _
    $region39: #{_lambda_.1} parent=1 // pred_check_branch
      %153 = sbr.rel (0) target = $region41
    $region40: #{_lambda_.1} parent=1 // pred_region
      %155 = dma.done [#allocation4], 128
    $region41: #{_lambda_.1} parent=1 // pred_fallthru
      _
    %156 = vsyncpa [#allocation3], 1
    %157 = vsyncpa [#allocation6], 1
    %158 = vsyncpa [#allocation4], 1

</llo_original>
